<compile_context>
chip_gen: v6e
topology: v6e:2x2x1
jax: 0.10.0
libtpu: 0.0.40
codegen_flags: <defaults>
</compile_context>

<pallas_src>
import functools
import math

import jax
import jax.numpy as jnp
from jax import lax
from jax.experimental import pallas as pl
from jax.experimental.pallas import tpu as pltpu


def _accum_chunks(x_ref, sum_ref, max_ref, n_chunks, valid_lanes=None):
    """Fold n_chunks 128-lane chunks of x_ref into the (1, C, 128) partials."""
    c = x_ref.shape[1]

    def body(k, carry):
        acc_s, acc_m = carry
        if isinstance(k, int):
            start = k * 128
        else:
            start = pl.multiple_of(k * 128, 128)
        chunk = x_ref[:, :, pl.ds(start, 128)].astype(jnp.float32)   # (1, C, 128)
        if valid_lanes is not None:
            lane = k * 128 + lax.broadcasted_iota(jnp.int32, chunk.shape, 2)
            ok = lane < valid_lanes
            chunk_s = jnp.where(ok, chunk, 0.0)
            chunk_m = jnp.where(ok, chunk, -jnp.inf)
        else:
            chunk_s = chunk
            chunk_m = chunk
        return acc_s + chunk_s, jnp.maximum(acc_m, chunk_m)

    init = (jnp.zeros((1, c, 128), jnp.float32),
            jnp.full((1, c, 128), -jnp.inf, dtype=jnp.float32))
    if n_chunks <= 8:
        acc_s, acc_m = init
        for k in range(n_chunks):
            acc_s, acc_m = body(k, (acc_s, acc_m))
    else:
        acc_s, acc_m = lax.fori_loop(0, n_chunks, body, init, unroll=8)

    sum_ref[...] += acc_s
    max_ref[...] = jnp.maximum(max_ref[...], acc_m)


def _pool_kernel(x_ref, sum_ref, max_ref, *, hw, ts, n_steps):
    # x_ref:   (1, C, ts)   spatial tile of one image (lane-dense over spatial)
    # sum_ref: (1, C, 128)  grid-resident f32 lane-partial sum accumulator
    # max_ref: (1, C, 128)  grid-resident f32 lane-partial max accumulator
    s = pl.program_id(1)

    @pl.when(s == 0)
    def _init():
        sum_ref[...] = jnp.zeros_like(sum_ref)
        max_ref[...] = jnp.full_like(max_ref, -jnp.inf)

    full_chunks = ts // 128
    has_tail = (n_steps * ts) > hw

    if not has_tail:
        _accum_chunks(x_ref, sum_ref, max_ref, full_chunks)
    else:
        last_valid = hw - (n_steps - 1) * ts          # valid lanes in last tile
        tail_chunks = -(-last_valid // 128)           # chunks with >=1 valid lane

        if n_steps > 1:
            @pl.when(s < n_steps - 1)
            def _steady():
                _accum_chunks(x_ref, sum_ref, max_ref, full_chunks)

        @pl.when(s == n_steps - 1)
        def _tail():
            _accum_chunks(x_ref, sum_ref, max_ref, tail_chunks,
                          valid_lanes=last_valid)


def _mlp_softmax_kernel(sum_ref, max_ref, w1t_ref, b1_ref, w2t_ref, b2_ref,
                        out_ref, *, inv_hw, c):
    # sum_ref/max_ref: (N, C, 128) f32 lane-partials from the pool kernel
    # w1t_ref: (C, Cr)  fc1 weight (pre-transposed), b1_ref: (1, Cr)
    # w2t_ref: (Cr, 2C) both branch fc2 weights concatenated, b2_ref: (1, 2C)
    # out_ref: (2, N, C) per-branch channel-softmax weights
    pooled_avg = jnp.sum(sum_ref[...], axis=2) * inv_hw      # (N, C)
    pooled_max = jnp.max(max_ref[...], axis=2)               # (N, C)
    z = pooled_avg + pooled_max
    # fc1(avg) + fc1(max) == (avg + max) @ W1^T + 2 * b1   (bias applied twice)
    shared = (jnp.dot(z, w1t_ref[...], preferred_element_type=jnp.float32)
              + 2.0 * b1_ref[...])                           # (N, Cr)
    logits = (jnp.dot(shared, w2t_ref[...], preferred_element_type=jnp.float32)
              + b2_ref[...])                                 # (N, 2C)
    out_ref[0, :, :] = jax.nn.softmax(logits[:, :c], axis=-1).astype(out_ref.dtype)
    out_ref[1, :, :] = jax.nn.softmax(logits[:, c:], axis=-1).astype(out_ref.dtype)


def cross_modality_branch_attention(x, w1, b1, w2a, b2a, w2b, b2b, *,
                                    tile_budget_bytes=2 * 1024 * 1024):
    """x: (N, C, H, W). fc1: w1 (Cr, C), b1 (Cr,). fc2_*: w (C, Cr), b (C,).

    Returns (branch_1_ca_weight, branch_2_ca_weight), each (N, C, 1, 1).
    """
    N, C, H, W = x.shape
    HW = H * W
    x2 = x.reshape(N, C, HW)                     # contiguous, metadata-only

    # --- Kernel 1: byte-budgeted spatial tile (multiple of 128, dtype-aware) ---
    itemsize = jnp.dtype(x.dtype).itemsize
    hw_pad = ((HW + 127) // 128) * 128
    ts = (tile_budget_bytes // (C * itemsize)) // 128 * 128
    ts = max(128, min(ts, hw_pad))
    n_steps = pl.cdiv(HW, ts)

    in_block_bytes = C * ts * itemsize
    out_block_bytes = 2 * C * 128 * 4
    vmem_limit = max(2 * (in_block_bytes + out_block_bytes) + (4 << 20), 32 << 20)
    vmem_limit = min(vmem_limit, 96 << 20)

    pool_kernel = functools.partial(_pool_kernel, hw=HW, ts=ts, n_steps=n_steps)
    sum_part, max_part = pl.pallas_call(
        pool_kernel,
        out_shape=(jax.ShapeDtypeStruct((N, C, 128), jnp.float32),
                   jax.ShapeDtypeStruct((N, C, 128), jnp.float32)),
        grid=(N, n_steps),
        in_specs=[pl.BlockSpec((1, C, ts), lambda n, s: (n, 0, s))],
        out_specs=(pl.BlockSpec((1, C, 128), lambda n, s: (n, 0, 0)),
                   pl.BlockSpec((1, C, 128), lambda n, s: (n, 0, 0))),
        compiler_params=pltpu.CompilerParams(
            dimension_semantics=("parallel", "arbitrary"),
            vmem_limit_bytes=vmem_limit),
    )(x2)

    # --- Kernel 2: batched epilogue (single call, M=N matmuls) ---
    w1t = jnp.transpose(w1).astype(jnp.float32)                           # (C, Cr)
    b1r = b1.reshape(1, -1).astype(jnp.float32)                           # (1, Cr)
    w2t = jnp.concatenate([jnp.transpose(w2a), jnp.transpose(w2b)],
                          axis=1).astype(jnp.float32)                     # (Cr, 2C)
    b2r = jnp.concatenate([b2a, b2b]).reshape(1, -1).astype(jnp.float32)  # (1, 2C)

    mlp_kernel = functools.partial(_mlp_softmax_kernel, inv_hw=1.0 / HW, c=C)
    attn = pl.pallas_call(
        mlp_kernel,
        out_shape=jax.ShapeDtypeStruct((2, N, C), x.dtype),
    )(sum_part, max_part, w1t, b1r, w2t, b2r)

    return attn[0].reshape(N, C, 1, 1), attn[1].reshape(N, C, 1, 1)


def cross_modality_inter_conv_forward(x, w1, b1, w2a, b2a, w2b, b2b):
    """Forward of CrossModalityInterConvModule (attention part only)."""
    # torch.chunk(input_tensor, 2, dim=1)
    x_branch_1, x_branch_2 = jnp.split(x, 2, axis=1)
    del x_branch_1, x_branch_2  # TODO(synk): ConvBnRelu undefined in reference; branch convs not translated.
    w_a, w_b = cross_modality_branch_attention(x, w1, b1, w2a, b2a, w2b, b2b)
    return w_a, w_b


def _reference(x, w1, b1, w2a, b2a, w2b, b2b):
    # pure-JAX reference of the same math
    N, C, H, W = x.shape
    avg = jnp.mean(x, axis=(2, 3))
    mx = jnp.max(x, axis=(2, 3))
    shared = (avg @ w1.T + b1) + (mx @ w1.T + b1)
    l1 = shared @ w2a.T + b2a
    l2 = shared @ w2b.T + b2b
    a1 = jax.nn.softmax(l1, axis=-1)
    a2 = jax.nn.softmax(l2, axis=-1)
    return a1.reshape(N, C, 1, 1), a2.reshape(N, C, 1, 1)


if __name__ == "__main__":
    N, C, H, W = 2, 16, 16, 16
    reduction_ratio = 2
    Cr = C // reduction_ratio

    key = jax.random.PRNGKey(0)
    k_x, k_fc1, k_fc2a, k_fc2b = jax.random.split(key, 4)
    x = jax.random.normal(k_x, (N, C, H, W), dtype=jnp.float32)

    def linear_init(k, out_f, in_f):
        # PyTorch nn.Linear default init: U(-1/sqrt(fan_in), 1/sqrt(fan_in))
        kw, kb = jax.random.split(k)
        bound = 1.0 / math.sqrt(in_f)
        w = jax.random.uniform(kw, (out_f, in_f), minval=-bound, maxval=bound,
                               dtype=jnp.float32)
        b = jax.random.uniform(kb, (out_f,), minval=-bound, maxval=bound,
                               dtype=jnp.float32)
        return w, b

    w1, b1 = linear_init(k_fc1, Cr, C)         # fc1
    w2a, b2a = linear_init(k_fc2a, C, Cr)      # fc2_branch_1
    w2b, b2b = linear_init(k_fc2b, C, Cr)      # fc2_branch_2

    forward = jax.jit(cross_modality_inter_conv_forward)
    y1, y2 = forward(x, w1, b1, w2a, b2a, w2b, b2b)
    y1, y2 = jax.block_until_ready((y1, y2))

    r1, r2 = _reference(x, w1, b1, w2a, b2a, w2b, b2b)
    assert y1.shape == (N, C, 1, 1) and y2.shape == (N, C, 1, 1)
    assert jnp.allclose(y1, r1, atol=1e-5, rtol=1e-4)
    assert jnp.allclose(y2, r2, atol=1e-5, rtol=1e-4)

    print("KERNEL_OK")
</pallas_src>

<mosaic_0001>
module attributes {stable_mosaic.version = 11 : i64} {
  func.func @_pool_kernel(%arg0: i32, %arg1: i32, %arg2: memref<1x16x256xf32, #tpu.memory_space<vmem>>, %arg3: memref<1x16x128xf32, #tpu.memory_space<vmem>>, %arg4: memref<1x16x128xf32, #tpu.memory_space<vmem>>) attributes {dimension_semantics = [#tpu.dimension_semantics<parallel>, #tpu.dimension_semantics<arbitrary>], iteration_bounds = array<i64: 2, 1>, scalar_prefetch = 0 : i64, scratch_operands = 0 : i64, tpu.core_type = #tpu.core_type<tc>, window_params = [{transform_indices = @transform_0, window_bounds = array<i64: 1, 16, 256>}, {transform_indices = @transform_1, window_bounds = array<i64: 1, 16, 128>}, {transform_indices = @transform_2, window_bounds = array<i64: 1, 16, 128>}]} {
    %c0_i32 = arith.constant 0 : i32
    %0 = arith.cmpi eq, %arg1, %c0_i32 : i32
    %1 = arith.extui %0 : i1 to i32
    %c0_i32_0 = arith.constant 0 : i32
    %2 = arith.cmpi ne, %1, %c0_i32_0 : i32
    scf.if %2 {
      %cst_18 = arith.constant 0.000000e+00 : f32
      %17 = vector.broadcast %cst_18 : f32 to vector<1x16x128xf32>
      %c0_19 = arith.constant 0 : index
      %c0_20 = arith.constant 0 : index
      %c0_21 = arith.constant 0 : index
      %18 = vector.load %arg3[%c0_19, %c0_20, %c0_21] : memref<1x16x128xf32, #tpu.memory_space<vmem>>, vector<1x16x128xf32>
      tpu.vector_store %arg3[%c0_19, %c0_20, %c0_21], %17 {strides = array<i32>} : memref<1x16x128xf32, #tpu.memory_space<vmem>>, vector<1x16x128xf32>,
      %cst_22 = arith.constant 0xFF800000 : f32
      %19 = vector.broadcast %cst_22 : f32 to vector<1x16x128xf32>
      %c0_23 = arith.constant 0 : index
      %c0_24 = arith.constant 0 : index
      %c0_25 = arith.constant 0 : index
      %20 = vector.load %arg4[%c0_23, %c0_24, %c0_25] : memref<1x16x128xf32, #tpu.memory_space<vmem>>, vector<1x16x128xf32>
      tpu.vector_store %arg4[%c0_23, %c0_24, %c0_25], %19 {strides = array<i32>} : memref<1x16x128xf32, #tpu.memory_space<vmem>>, vector<1x16x128xf32>,
    } else {
    }
    %cst = arith.constant 0.000000e+00 : f32
    %3 = vector.broadcast %cst : f32 to vector<1x16x128xf32>
    %cst_1 = arith.constant 0xFF800000 : f32
    %4 = vector.broadcast %cst_1 : f32 to vector<1x16x128xf32>
    %c0 = arith.constant 0 : index
    %c0_2 = arith.constant 0 : index
    %c0_3 = arith.constant 0 : index
    %5 = vector.load %arg2[%c0, %c0_2, %c0_3] : memref<1x16x256xf32, #tpu.memory_space<vmem>>, vector<1x16x128xf32>
    %6 = arith.addf %3, %5 : vector<1x16x128xf32>
    %7 = arith.maximumf %4, %5 : vector<1x16x128xf32>
    %c0_4 = arith.constant 0 : index
    %c0_5 = arith.constant 0 : index
    %c128 = arith.constant 128 : index
    %8 = vector.load %arg2[%c0_4, %c0_5, %c128] : memref<1x16x256xf32, #tpu.memory_space<vmem>>, vector<1x16x128xf32>
    %9 = arith.addf %6, %8 : vector<1x16x128xf32>
    %10 = arith.maximumf %7, %8 : vector<1x16x128xf32>
    %c0_6 = arith.constant 0 : index
    %c0_7 = arith.constant 0 : index
    %c0_8 = arith.constant 0 : index
    %11 = vector.load %arg3[%c0_6, %c0_7, %c0_8] : memref<1x16x128xf32, #tpu.memory_space<vmem>>, vector<1x16x128xf32>
    %12 = arith.addf %11, %9 : vector<1x16x128xf32>
    %c0_9 = arith.constant 0 : index
    %c0_10 = arith.constant 0 : index
    %c0_11 = arith.constant 0 : index
    %13 = vector.load %arg3[%c0_9, %c0_10, %c0_11] : memref<1x16x128xf32, #tpu.memory_space<vmem>>, vector<1x16x128xf32>
    tpu.vector_store %arg3[%c0_9, %c0_10, %c0_11], %12 {strides = array<i32>} : memref<1x16x128xf32, #tpu.memory_space<vmem>>, vector<1x16x128xf32>,
    %c0_12 = arith.constant 0 : index
    %c0_13 = arith.constant 0 : index
    %c0_14 = arith.constant 0 : index
    %14 = vector.load %arg4[%c0_12, %c0_13, %c0_14] : memref<1x16x128xf32, #tpu.memory_space<vmem>>, vector<1x16x128xf32>
    %15 = arith.maximumf %14, %10 : vector<1x16x128xf32>
    %c0_15 = arith.constant 0 : index
    %c0_16 = arith.constant 0 : index
    %c0_17 = arith.constant 0 : index
    %16 = vector.load %arg4[%c0_15, %c0_16, %c0_17] : memref<1x16x128xf32, #tpu.memory_space<vmem>>, vector<1x16x128xf32>
    tpu.vector_store %arg4[%c0_15, %c0_16, %c0_17], %15 {strides = array<i32>} : memref<1x16x128xf32, #tpu.memory_space<vmem>>, vector<1x16x128xf32>,
    return
  }
  func.func @transform_0(%arg0: i32, %arg1: i32) -> (i32, i32, i32) {
    %c0_i32 = arith.constant 0 : i32
    %c0_i32_0 = arith.constant 0 : i32
    return %arg0, %c0_i32, %arg1 : i32, i32, i32
  }
  func.func @transform_1(%arg0: i32, %arg1: i32) -> (i32, i32, i32) {
    %c0_i32 = arith.constant 0 : i32
    %c0_i32_0 = arith.constant 0 : i32
    %c0_i32_1 = arith.constant 0 : i32
    return %arg0, %c0_i32, %c0_i32_0 : i32, i32, i32
  }
  func.func @transform_2(%arg0: i32, %arg1: i32) -> (i32, i32, i32) {
    %c0_i32 = arith.constant 0 : i32
    %c0_i32_0 = arith.constant 0 : i32
    %c0_i32_1 = arith.constant 0 : i32
    return %arg0, %c0_i32, %c0_i32_0 : i32, i32, i32
  }
}

module attributes {stable_mosaic.version = 11 : i64} {
  func.func @_mlp_softmax_kernel(%arg0: memref<2x16x128xf32, #tpu.memory_space<vmem>>, %arg1: memref<2x16x128xf32, #tpu.memory_space<vmem>>, %arg2: memref<16x8xf32, #tpu.memory_space<vmem>>, %arg3: memref<1x8xf32, #tpu.memory_space<vmem>>, %arg4: memref<8x32xf32, #tpu.memory_space<vmem>>, %arg5: memref<1x32xf32, #tpu.memory_space<vmem>>, %arg6: memref<2x2x16xf32, #tpu.memory_space<vmem>>) attributes {dimension_semantics = [], scalar_prefetch = 0 : i64, scratch_operands = 0 : i64, tpu.core_type = #tpu.core_type<tc>} {
    %c0 = arith.constant 0 : index
    %c0_0 = arith.constant 0 : index
    %c0_1 = arith.constant 0 : index
    %0 = vector.load %arg0[%c0, %c0_0, %c0_1] : memref<2x16x128xf32, #tpu.memory_space<vmem>>, vector<2x16x128xf32>
    %cst = arith.constant dense<0.000000e+00> : vector<2x16xf32>
    %1 = vector.multi_reduction <add>, %0, %cst [2] : vector<2x16x128xf32> to vector<2x16xf32>
    %cst_2 = arith.constant 3.906250e-03 : f32
    %2 = vector.broadcast %cst_2 : f32 to vector<2x16xf32>
    %3 = arith.mulf %1, %2 : vector<2x16xf32>
    %c0_3 = arith.constant 0 : index
    %c0_4 = arith.constant 0 : index
    %c0_5 = arith.constant 0 : index
    %4 = vector.load %arg1[%c0_3, %c0_4, %c0_5] : memref<2x16x128xf32, #tpu.memory_space<vmem>>, vector<2x16x128xf32>
    %cst_6 = arith.constant dense<0xFF800000> : vector<2x16xf32>
    %5 = vector.multi_reduction <maximumf>, %4, %cst_6 [2] : vector<2x16x128xf32> to vector<2x16xf32>
    %6 = arith.addf %3, %5 : vector<2x16xf32>
    %c0_7 = arith.constant 0 : index
    %c0_8 = arith.constant 0 : index
    %7 = vector.load %arg2[%c0_7, %c0_8] : memref<16x8xf32, #tpu.memory_space<vmem>>, vector<16x8xf32>
    %cst_9 = arith.constant dense<0.000000e+00> : vector<2x8xf32>
    %8 = tpu.matmul %6, %7, %cst_9 {dimension_numbers = #tpu.dot_dimension_numbers<[1], [0], [0], [1], [0, 0, 1, 1], [], []>} : vector<2x16xf32>, vector<16x8xf32>, vector<2x8xf32> -> vector<2x8xf32>
    %c0_10 = arith.constant 0 : index
    %c0_11 = arith.constant 0 : index
    %9 = vector.load %arg3[%c0_10, %c0_11] : memref<1x8xf32, #tpu.memory_space<vmem>>, vector<1x8xf32>
    %cst_12 = arith.constant 2.000000e+00 : f32
    %10 = vector.broadcast %cst_12 : f32 to vector<1x8xf32>
    %11 = arith.mulf %10, %9 : vector<1x8xf32>
    %12 = vector.broadcast %11 : vector<1x8xf32> to vector<2x8xf32>
    %13 = arith.addf %8, %12 : vector<2x8xf32>
    %c0_13 = arith.constant 0 : index
    %c0_14 = arith.constant 0 : index
    %14 = vector.load %arg4[%c0_13, %c0_14] : memref<8x32xf32, #tpu.memory_space<vmem>>, vector<8x32xf32>
    %cst_15 = arith.constant dense<0.000000e+00> : vector<2x32xf32>
    %15 = tpu.matmul %13, %14, %cst_15 {dimension_numbers = #tpu.dot_dimension_numbers<[1], [0], [0], [1], [0, 0, 1, 1], [], []>} : vector<2x8xf32>, vector<8x32xf32>, vector<2x32xf32> -> vector<2x32xf32>
    %c0_16 = arith.constant 0 : index
    %c0_17 = arith.constant 0 : index
    %16 = vector.load %arg5[%c0_16, %c0_17] : memref<1x32xf32, #tpu.memory_space<vmem>>, vector<1x32xf32>
    %17 = vector.broadcast %16 : vector<1x32xf32> to vector<2x32xf32>
    %18 = arith.addf %15, %17 : vector<2x32xf32>
    %19 = vector.extract_strided_slice %18 {offsets = [0, 0], sizes = [2, 16], strides = [1, 1]} : vector<2x32xf32> to vector<2x16xf32>
    %cst_18 = arith.constant dense<0xFF800000> : vector<2xf32>
    %20 = vector.multi_reduction <maximumf>, %19, %cst_18 [1] : vector<2x16xf32> to vector<2xf32>
    %cst_19 = arith.constant 0xFF800000 : f32
    %21 = vector.broadcast %cst_19 : f32 to vector<2xf32>
    %22 = arith.maximumf %21, %20 : vector<2xf32>
    %23 = vector.shape_cast %22 : vector<2xf32> to vector<2x1xf32>
    %24 = vector.broadcast %23 : vector<2x1xf32> to vector<2x16xf32>
    %25 = arith.subf %19, %24 : vector<2x16xf32>
    %26 = math.exp %25 : vector<2x16xf32>
    %cst_20 = arith.constant dense<0.000000e+00> : vector<2xf32>
    %27 = vector.multi_reduction <add>, %26, %cst_20 [1] : vector<2x16xf32> to vector<2xf32>
    %28 = vector.shape_cast %27 : vector<2xf32> to vector<2x1xf32>
    %29 = vector.broadcast %28 : vector<2x1xf32> to vector<2x16xf32>
    %30 = arith.divf %26, %29 : vector<2x16xf32>
    %c0_21 = arith.constant 0 : index
    %c0_22 = arith.constant 0 : index
    %c0_23 = arith.constant 0 : index
    %31 = vector.load %arg6[%c0_21, %c0_22, %c0_23] : memref<2x2x16xf32, #tpu.memory_space<vmem>>, vector<1x2x16xf32>
    %32 = vector.shape_cast %31 : vector<1x2x16xf32> to vector<2x16xf32>
    %33 = vector.shape_cast %30 : vector<2x16xf32> to vector<1x2x16xf32>
    tpu.vector_store %arg6[%c0_21, %c0_22, %c0_23], %33 {strides = array<i32>} : memref<2x2x16xf32, #tpu.memory_space<vmem>>, vector<1x2x16xf32>,
    %34 = vector.extract_strided_slice %18 {offsets = [0, 16], sizes = [2, 16], strides = [1, 1]} : vector<2x32xf32> to vector<2x16xf32>
    %cst_24 = arith.constant dense<0xFF800000> : vector<2xf32>
    %35 = vector.multi_reduction <maximumf>, %34, %cst_24 [1] : vector<2x16xf32> to vector<2xf32>
    %cst_25 = arith.constant 0xFF800000 : f32
    %36 = vector.broadcast %cst_25 : f32 to vector<2xf32>
    %37 = arith.maximumf %36, %35 : vector<2xf32>
    %38 = vector.shape_cast %37 : vector<2xf32> to vector<2x1xf32>
    %39 = vector.broadcast %38 : vector<2x1xf32> to vector<2x16xf32>
    %40 = arith.subf %34, %39 : vector<2x16xf32>
    %41 = math.exp %40 : vector<2x16xf32>
    %cst_26 = arith.constant dense<0.000000e+00> : vector<2xf32>
    %42 = vector.multi_reduction <add>, %41, %cst_26 [1] : vector<2x16xf32> to vector<2xf32>
    %43 = vector.shape_cast %42 : vector<2xf32> to vector<2x1xf32>
    %44 = vector.broadcast %43 : vector<2x1xf32> to vector<2x16xf32>
    %45 = arith.divf %41, %44 : vector<2x16xf32>
    %c1 = arith.constant 1 : index
    %c0_27 = arith.constant 0 : index
    %c0_28 = arith.constant 0 : index
    %46 = vector.load %arg6[%c1, %c0_27, %c0_28] : memref<2x2x16xf32, #tpu.memory_space<vmem>>, vector<1x2x16xf32>
    %47 = vector.shape_cast %46 : vector<1x2x16xf32> to vector<2x16xf32>
    %48 = vector.shape_cast %45 : vector<2x16xf32> to vector<1x2x16xf32>
    tpu.vector_store %arg6[%c1, %c0_27, %c0_28], %48 {strides = array<i32>} : memref<2x2x16xf32, #tpu.memory_space<vmem>>, vector<1x2x16xf32>,
    return
  }
}

</mosaic_0001>

<llo_original>
// kernel: cross_modality_inter_conv_forward.3
$region0: #{cross_modality_inter_conv_forward.3}
  #allocation0 [shape = 'u32[]', space=smem, size = 0x4, offset = 0x4, fixed_abs, tag = 'smem constant byte address 0x4 - core index']
  #allocation1 [shape = 'u32[144,128]{1,0:T(1,128)}', space=vmem, size = 0x12000, scoped, tag = 'internal scratch']
  %s0 = inlined_call_operand.vmem [shape: f32[2,16,128], index: 0, kind: input, shape index: {}]
  %s1 = inlined_call_operand.vmem [shape: f32[2,16,128], index: 1, kind: input, shape index: {}]
  %s2 = inlined_call_operand.vmem [shape: f32[16,8], index: 2, kind: input, shape index: {}]
  %s3 = inlined_call_operand.vmem [shape: f32[1,8], index: 3, kind: input, shape index: {}]
  %s4 = inlined_call_operand.vmem [shape: f32[8,32], index: 4, kind: input, shape index: {}]
  %s5 = inlined_call_operand.vmem [shape: f32[1,32], index: 5, kind: input, shape index: {}]
  %s6 = inlined_call_operand.vmem [shape: f32[2,2,16], index: 6, kind: output, shape index: {}]
  %s7 = sld [smem:[#allocation0]]
  $region34: #{cross_modality_inter_conv_forward.3} parent=0
    _
  %s9 = ssub.s32 1, %s7
  %s10 = scalar_select 0, %s9, %s7
  // Predicated region
  $region2: #{cross_modality_inter_conv_forward.3} parent=0 // pred_check
    _
  $region3: #{cross_modality_inter_conv_forward.3} parent=0 // pred_check_branch
    %12 = sbr.rel (0) target = $region5
  $region4: #{cross_modality_inter_conv_forward.3} parent=0 // pred_region
    _
  $region5: #{cross_modality_inter_conv_forward.3} parent=0 // pred_fallthru
    _
  // Predicated region
  $region6: #{cross_modality_inter_conv_forward.3} parent=0 // pred_check
    _
  $region7: #{cross_modality_inter_conv_forward.3} parent=0 // pred_check_branch
    %14 = sbr.rel (0) target = $region9
  $region8: #{cross_modality_inter_conv_forward.3} parent=0 // pred_region
    _
  $region9: #{cross_modality_inter_conv_forward.3} parent=0 // pred_fallthru
    _
  // Predicated region
  $region10: #{cross_modality_inter_conv_forward.3} parent=0 // pred_check
    _
  $region11: #{cross_modality_inter_conv_forward.3} parent=0 // pred_check_branch
    %16 = sbr.rel (0) target = $region13
  $region12: #{cross_modality_inter_conv_forward.3} parent=0 // pred_region
    _
  $region13: #{cross_modality_inter_conv_forward.3} parent=0 // pred_fallthru
    _
  // Predicated region
  $region14: #{cross_modality_inter_conv_forward.3} parent=0 // pred_check
    _
  $region15: #{cross_modality_inter_conv_forward.3} parent=0 // pred_check_branch
    %18 = sbr.rel (0) target = $region17
  $region16: #{cross_modality_inter_conv_forward.3} parent=0 // pred_region
    _
  $region17: #{cross_modality_inter_conv_forward.3} parent=0 // pred_fallthru
    _
  // Predicated region
  $region18: #{cross_modality_inter_conv_forward.3} parent=0 // pred_check
    _
  $region19: #{cross_modality_inter_conv_forward.3} parent=0 // pred_check_branch
    %20 = sbr.rel (0) target = $region21
  $region20: #{cross_modality_inter_conv_forward.3} parent=0 // pred_region
    _
  $region21: #{cross_modality_inter_conv_forward.3} parent=0 // pred_fallthru
    _
  // Predicated region
  $region22: #{cross_modality_inter_conv_forward.3} parent=0 // pred_check
    _
  $region23: #{cross_modality_inter_conv_forward.3} parent=0 // pred_check_branch
    %22 = sbr.rel (0) target = $region25
  $region24: #{cross_modality_inter_conv_forward.3} parent=0 // pred_region
    _
  $region25: #{cross_modality_inter_conv_forward.3} parent=0 // pred_fallthru
    _
  %v23 = vld [vmem:[%s0] sm:$0xff]
  %v24 = vld [vmem:[%s0 + $0x8] sm:$0xff]
  %v25 = vld [vmem:[%s0 + $0x10] sm:$0xff]
  %v26 = vld [vmem:[%s0 + $0x18] sm:$0xff]
  %27 = vadd.xlane.f32.xlu0 %v23
  %v28 = vpop.xlane.xlu0 %27
  %29 = vadd.xlane.f32.xlu0 %v24
  %v30 = vpop.xlane.xlu0 %29
  %31 = vadd.xlane.f32.xlu0 %v25
  %v32 = vpop.xlane.xlu0 %31
  %33 = vadd.xlane.f32.xlu0 %v26
  %v34 = vpop.xlane.xlu0 %33
  %v35 = vmul.f32 %v28, 0.00390625
  %v36 = vmul.f32 %v30, 0.00390625
  %v37 = vmul.f32 %v32, 0.00390625
  %v38 = vmul.f32 %v34, 0.00390625
  %v39 = vld [vmem:[%s1] sm:$0xff]
  %v40 = vld [vmem:[%s1 + $0x8] sm:$0xff]
  %v41 = vld [vmem:[%s1 + $0x10] sm:$0xff]
  %v42 = vld [vmem:[%s1 + $0x18] sm:$0xff]
  %43 = vmax.xlane.f32.xlu0 %v39
  %v44 = vpop.xlane.xlu0 %43
  %45 = vmax.xlane.f32.xlu0 %v40
  %v46 = vpop.xlane.xlu0 %45
  %47 = vmax.xlane.f32.xlu0 %v41
  %v48 = vpop.xlane.xlu0 %47
  %49 = vmax.xlane.f32.xlu0 %v42
  %v50 = vpop.xlane.xlu0 %49
  %v51 = vadd.f32 %v35, %v44
  %v52 = vadd.f32 %v36, %v46
  %v53 = vadd.f32 %v37, %v48
  %v54 = vadd.f32 %v38, %v50
  %v55 = vld [vmem:[%s2] sm:$0xff]
  %v56 = vld [vmem:[%s2 + $0x8] sm:$0xff]
  %v57 = vld [vmem:[%s3] sm:$0x1]
  %v58 = vmul.f32 %v57, 2.0
  %v60 = vlaneseq
  %v61 = vshrl.u32 %v60, 7
  %v62 = vsub.s32 0, %v61
  %v63 = vrot.slane %v58, %v62
  %v69 = vlaneseq
  %v70 = vand.u32 %v69, 127
  %v71 = vlaneseq
  %v72 = vshrl.u32 %v71, 7
  %v73 = vsub.s32 %v70, %v72
  %v74 = vrot.slane %v51, %v73
  %v75 = vadd.s32 %v70, 4294967288
  %v76 = vlaneseq
  %v77 = vshrl.u32 %v76, 7
  %v78 = vsub.s32 %v75, %v77
  %v79 = vrot.slane %v52, %v78
  %vm80 = vcmask 130112
  %v81 = vsel %vm80, %v79, %v74
  %v82 = vlaneseq
  %v83 = vshrl.u32 %v82, 7
  %v84 = vsub.s32 %v70, %v83
  %v85 = vrot.slane %v53, %v84
  %v86 = vlaneseq
  %v87 = vshrl.u32 %v86, 7
  %v88 = vsub.s32 %v75, %v87
  %v89 = vrot.slane %v54, %v88
  %v90 = vsel %vm80, %v89, %v85
  %vm91 = vcmask 1041409
  %v92 = vsel %vm91, %v90, %v81
  %vm93 = vcmask 130048
  %v94 = vsel %vm93, %v92, 0
  %96 = vmatprep.subr.mxu0 0.0
  %97 = vmatpush1.msra.mxu0 0.0
  %98 = vmatprep.subr.mxu0 0.0
  %99 = vmatpush1.msra.mxu0 0.0
  %100 = vmatprep.subr.mxu0 0.0
  %101 = vmatpush1.msra.mxu0 0.0
  %102 = vmatprep.subr.mxu0 0.0
  %103 = vmatpush1.msra.mxu0 0.0
  %104 = vmatprep.subr.mxu0 0.0
  %105 = vmatpush1.msra.mxu0 0.0
  %106 = vmatprep.subr.mxu0 0.0
  %107 = vmatpush1.msra.mxu0 0.0
  %108 = vmatprep.subr.mxu0 0.0
  %109 = vmatpush1.msra.mxu0 0.0
  %110 = vmatprep.subr.mxu0 0.0
  %111 = vmatpush1.msra.mxu0 0.0
  %112 = vmatprep.subr.mxu0 0.0
  %113 = vmatpush1.msra.mxu0 0.0
  %114 = vmatprep.subr.mxu0 0.0
  %115 = vmatpush1.msra.mxu0 0.0
  %116 = vmatprep.subr.mxu0 0.0
  %117 = vmatpush1.msra.mxu0 0.0
  %118 = vmatprep.subr.mxu0 0.0
  %119 = vmatpush1.msra.mxu0 0.0
  %120 = vmatprep.subr.mxu0 0.0
  %121 = vmatpush1.msra.mxu0 0.0
  %122 = vmatprep.subr.mxu0 0.0
  %123 = vmatpush1.msra.mxu0 0.0
  %124 = vmatprep.subr.mxu0 0.0
  %125 = vmatpush1.msra.mxu0 %v56
  %126 = vmatprep.subr.mxu0 0.0
  %127 = vmatpush1.msra.mxu0 %v55
  %128 = vmatprep.subr.mxu0 0.0
  %129 = vmatpush2.msra.mxu0 0.0
  %130 = vmatprep.subr.mxu0 0.0
  %131 = vmatpush2.msra.mxu0 0.0
  %132 = vmatprep.subr.mxu0 0.0
  %133 = vmatpush2.msra.mxu0 0.0
  %134 = vmatprep.subr.mxu0 0.0
  %135 = vmatpush2.msra.mxu0 0.0
  %136 = vmatprep.subr.mxu0 0.0
  %137 = vmatpush2.msra.mxu0 0.0
  %138 = vmatprep.subr.mxu0 0.0
  %139 = vmatpush2.msra.mxu0 0.0
  %140 = vmatprep.subr.mxu0 0.0
  %141 = vmatpush2.msra.mxu0 0.0
  %142 = vmatprep.subr.mxu0 0.0
  %143 = vmatpush2.msra.mxu0 0.0
  %144 = vmatprep.subr.mxu0 0.0
  %145 = vmatpush2.msra.mxu0 0.0
  %146 = vmatprep.subr.mxu0 0.0
  %147 = vmatpush2.msra.mxu0 0.0
  %148 = vmatprep.subr.mxu0 0.0
  %149 = vmatpush2.msra.mxu0 0.0
  %150 = vmatprep.subr.mxu0 0.0
  %151 = vmatpush2.msra.mxu0 0.0
  %152 = vmatprep.subr.mxu0 0.0
  %153 = vmatpush2.msra.mxu0 0.0
  %154 = vmatprep.subr.mxu0 0.0
  %155 = vmatpush2.msra.mxu0 0.0
  %156 = vmatprep.subr.mxu0 0.0
  %157 = vmatpush2.msra.mxu0 0.0
  %158 = vmatprep.subr.mxu0 0.0
  %159 = vmatpush2.msra.mxu0 0.0
  %160 = vmatprep.mubr.f32.mxu0 0.0
  %161 = vmatmul.mubr.f32.gmra.mxu0 %v94
  %v162 = vpop.f32.mrf.mxu0
  %v163 = vadd.f32 %v63, %v162
  %v164 = vpop.f32.mrf.mxu0
  %165 = vdwg.mxu0
  %v166 = vld [vmem:[%s4] sm:$0xff]
  %v167 = vld [vmem:[%s5] sm:$0x1]
  %v169 = vlaneseq
  %v170 = vshrl.u32 %v169, 7
  %v171 = vsub.s32 0, %v170
  %v172 = vrot.slane %v167, %v171
  %vm174 = vcmask 64512
  %v176 = vsel %vm174, %v163, 0
  %178 = vmatprep.subr.mxu0 0.0
  %179 = vmatpush1.msra.mxu0 0.0
  %180 = vmatprep.subr.mxu0 0.0
  %181 = vmatpush1.msra.mxu0 0.0
  %182 = vmatprep.subr.mxu0 0.0
  %183 = vmatpush1.msra.mxu0 0.0
  %184 = vmatprep.subr.mxu0 0.0
  %185 = vmatpush1.msra.mxu0 0.0
  %186 = vmatprep.subr.mxu0 0.0
  %187 = vmatpush1.msra.mxu0 0.0
  %188 = vmatprep.subr.mxu0 0.0
  %189 = vmatpush1.msra.mxu0 0.0
  %190 = vmatprep.subr.mxu0 0.0
  %191 = vmatpush1.msra.mxu0 0.0
  %192 = vmatprep.subr.mxu0 0.0
  %193 = vmatpush1.msra.mxu0 0.0
  %194 = vmatprep.subr.mxu0 0.0
  %195 = vmatpush1.msra.mxu0 0.0
  %196 = vmatprep.subr.mxu0 0.0
  %197 = vmatpush1.msra.mxu0 0.0
  %198 = vmatprep.subr.mxu0 0.0
  %199 = vmatpush1.msra.mxu0 0.0
  %200 = vmatprep.subr.mxu0 0.0
  %201 = vmatpush1.msra.mxu0 0.0
  %202 = vmatprep.subr.mxu0 0.0
  %203 = vmatpush1.msra.mxu0 0.0
  %204 = vmatprep.subr.mxu0 0.0
  %205 = vmatpush1.msra.mxu0 0.0
  %206 = vmatprep.subr.mxu0 0.0
  %207 = vmatpush1.msra.mxu0 0.0
  %208 = vmatprep.subr.mxu0 0.0
  %209 = vmatpush1.msra.mxu0 %v166
  %210 = vmatprep.subr.mxu0 0.0
  %211 = vmatpush2.msra.mxu0 0.0
  %212 = vmatprep.subr.mxu0 0.0
  %213 = vmatpush2.msra.mxu0 0.0
  %214 = vmatprep.subr.mxu0 0.0
  %215 = vmatpush2.msra.mxu0 0.0
  %216 = vmatprep.subr.mxu0 0.0
  %217 = vmatpush2.msra.mxu0 0.0
  %218 = vmatprep.subr.mxu0 0.0
  %219 = vmatpush2.msra.mxu0 0.0
  %220 = vmatprep.subr.mxu0 0.0
  %221 = vmatpush2.msra.mxu0 0.0
  %222 = vmatprep.subr.mxu0 0.0
  %223 = vmatpush2.msra.mxu0 0.0
  %224 = vmatprep.subr.mxu0 0.0
  %225 = vmatpush2.msra.mxu0 0.0
  %226 = vmatprep.subr.mxu0 0.0
  %227 = vmatpush2.msra.mxu0 0.0
  %228 = vmatprep.subr.mxu0 0.0
  %229 = vmatpush2.msra.mxu0 0.0
  %230 = vmatprep.subr.mxu0 0.0
  %231 = vmatpush2.msra.mxu0 0.0
  %232 = vmatprep.subr.mxu0 0.0
  %233 = vmatpush2.msra.mxu0 0.0
  %234 = vmatprep.subr.mxu0 0.0
  %235 = vmatpush2.msra.mxu0 0.0
  %236 = vmatprep.subr.mxu0 0.0
  %237 = vmatpush2.msra.mxu0 0.0
  %238 = vmatprep.subr.mxu0 0.0
  %239 = vmatpush2.msra.mxu0 0.0
  %240 = vmatprep.subr.mxu0 0.0
  %241 = vmatpush2.msra.mxu0 0.0
  %242 = vmatprep.mubr.f32.mxu0 0.0
  %243 = vmatmul.mubr.f32.gmra.mxu0 %v176
  %v244 = vpop.f32.mrf.mxu0
  %v245 = vadd.f32 %v172, %v244
  %v246 = vpop.f32.mrf.mxu0
  %247 = vdwg.mxu0
  %vm248 = vcmask 123904
  %v249 = vsel %vm248, %v245, -inf
  %250 = vmax.xlane.f32.xlu0 %v249
  %v251 = vpop.xlane.xlu0 %250
  %v252 = vsub.f32 %v245, %v251
  %v253 = vmul.f32 %v252, 1.442695
  %v254 = vpow.pop %v253
  %v255 = vsel %vm248, %v254, 0.0
  %256 = vadd.xlane.f32.xlu0 %v255
  %v257 = vpop.xlane.xlu0 %256
  %v258 = vrcp.pop %v257
  %v259 = vmul.f32 %v254, %v258
  %260 = vst.msk [vmem:[%s6] sm:$0x3] %vm248, %v259
  %vm261 = vcmask 255104
  %v262 = vsel %vm261, %v245, -inf
  %263 = vmax.xlane.f32.xlu0 %v262
  %v264 = vpop.xlane.xlu0 %263
  %v265 = vsub.f32 %v245, %v264
  %v266 = vmul.f32 %v265, 1.442695
  %v267 = vpow.pop %v266
  %269 = vrot.lane.b32.xlu0 %v267, 112
  %v270 = vpop.permute.xlu0 %269
  %v272 = vsel %vm248, %v270, 0.0
  %273 = vadd.xlane.f32.xlu0 %v272
  %v274 = vpop.xlane.xlu0 %273
  %v275 = vrcp.pop %v274
  %v276 = vmul.f32 %v267, %v275
  %278 = vrot.lane.b32.xlu0 %v276, 112
  %v279 = vpop.permute.xlu0 %278
  %s281 = scalar_lea.vmem %s6, 2
  %282 = vst.msk [vmem:[%s281] sm:$0x3] %vm248, %v279
  // Predicated region
  $region26: #{cross_modality_inter_conv_forward.3} parent=0 // pred_check
    _
  $region27: #{cross_modality_inter_conv_forward.3} parent=0 // pred_check_branch
    %284 = sbr.rel (0) target = $region29
  $region28: #{cross_modality_inter_conv_forward.3} parent=0 // pred_region
    _
  $region29: #{cross_modality_inter_conv_forward.3} parent=0 // pred_fallthru
    _
  // Predicated region
  $region30: #{cross_modality_inter_conv_forward.3} parent=0 // pred_check
    _
  $region31: #{cross_modality_inter_conv_forward.3} parent=0 // pred_check_branch
    %286 = sbr.rel (0) target = $region33
  $region32: #{cross_modality_inter_conv_forward.3} parent=0 // pred_region
    _
  $region33: #{cross_modality_inter_conv_forward.3} parent=0 // pred_fallthru
    _

// kernel: cross_modality_inter_conv_forward.2
$region0: #{cross_modality_inter_conv_forward.2}
  #allocation0 [shape = 'u32[]', space=smem, size = 0x4, offset = 0x4, fixed_abs, tag = 'smem constant byte address 0x4 - core index']
  #allocation1 [shape = 'u32[144,128]{1,0:T(1,128)}', space=vmem, size = 0x12000, scoped, tag = 'internal scratch']
  %s0 = inlined_call_operand.vmem [shape: f32[2,16,256], index: 0, kind: input, shape index: {}]
  %s1 = inlined_call_operand.vmem [shape: f32[2,16,128], index: 1, kind: output, shape index: {0}]
  %s2 = inlined_call_operand.vmem [shape: f32[2,16,128], index: 2, kind: output, shape index: {1}]
  %3 = xla_tuple %s1, %s2
  %s4 = sld [smem:[#allocation0]]
  $region49: #{cross_modality_inter_conv_forward.2} parent=0
    _
  %s6 = ssub.s32 1, %s4
  %s7 = scalar_select 0, %s6, %s4
  loop: start=0, step=1, limit=4
  $region2: #{cross_modality_inter_conv_forward.2} parent=0 // loop_pre_header
    _
  $region3: #{cross_modality_inter_conv_forward.2} parent=0 // loop_header
    %s9 = sphi 0, %s13
    %p10 = scmp.ge.s32.totalorder %s9, 4
    %s16 = sphi 0, %s28
    %s17 = sphi 0, %s24
    %s18 = sphi 0, %s16
    %s19 = sphi 0, %s17
    %s20 = sphi 0, %s18
    %s21 = sphi 0, %s19
    %s33 = sphi 0, %s35
    %s36 = sphi 0, %s33
    %s37 = sphi 0, %s36
    %s53 = sphi 0, %s37
    %s59 = sphi 0, %s61
    %s62 = sphi 0, %s59
    %s63 = sphi 0, %s62
    %s79 = sphi 0, %s63
    %s85 = sphi 0, %s87
    %s88 = sphi 0, %s85
    %s89 = sphi 0, %s88
    %s105 = sphi 0, %s89
  $region4: #{cross_modality_inter_conv_forward.2} parent=0 // loop_header_branch
    %12 = sbr.rel (%p10) target = $region8
  $region5: #{cross_modality_inter_conv_forward.2} parent=0 // loop_body
    %s14 = ssub.s32 %s9, 1
    %s15 = ssub.s32 %s9, 2
    %s22 = sadd.s32 1, %s17
    %p23 = scmp.ge.s32.totalorder %s22, 1
    %s24 = scalar_select %p23, 0, %s22
    %s25 = sadd.s32 1, %s16
    %s26 = scalar_select %p23, %s25, %s16
    %p27 = scmp.ge.s32.totalorder %s26, 2
    %s28 = scalar_select %p27, 0, %s26
    %s29 = ssub.s32 %s16, %s28
    %s30 = ssub.s32 %s17, %s24
    %s31 = sor.u32 %s29, %s30
    %p32 = scmp.eq.s32.totalorder %s31, 0
    %s34 = sadd.s32 %s33, 1
    %s35 = scalar_select %p32, %s33, %s34
    %p38 = pneg %p32
    %p39 = scmp.eq.s32.totalorder %s9, 1
    %p40 = por %p38, %p39
    %p41 = scmp.ne.s32.totalorder %s33, %s36
    %p42 = scmp.eq.s32.totalorder %s9, 0
    %p43 = por %p41, %p42
    %p44 = scmp.ne.s32.totalorder %s33, %s36
    %p45 = scmp.eq.s32.totalorder %s14, 1
    %p46 = por %p44, %p45
    %p47 = scmp.ne.s32.totalorder %s36, %s37
    %p48 = scmp.eq.s32.totalorder %s14, 0
    %p49 = por %p47, %p48
    %p50 = scmp.ne.s32.totalorder %s36, %s37
    %p51 = scmp.eq.s32.totalorder %s15, 1
    %p52 = por %p50, %p51
    %p54 = scmp.ne.s32.totalorder %s37, %s53
    %p55 = scmp.eq.s32.totalorder %s15, 0
    %p56 = por %p54, %p55
    %s57 = ssub.s32 %s16, %s28
    %p58 = scmp.eq.s32.totalorder %s57, 0
    %s60 = sadd.s32 %s59, 1
    %s61 = scalar_select %p58, %s59, %s60
    %p64 = pneg %p58
    %p65 = scmp.eq.s32.totalorder %s9, 1
    %p66 = por %p64, %p65
    %p67 = scmp.ne.s32.totalorder %s59, %s62
    %p68 = scmp.eq.s32.totalorder %s9, 0
    %p69 = por %p67, %p68
    %p70 = scmp.ne.s32.totalorder %s59, %s62
    %p71 = scmp.eq.s32.totalorder %s14, 1
    %p72 = por %p70, %p71
    %p73 = scmp.ne.s32.totalorder %s62, %s63
    %p74 = scmp.eq.s32.totalorder %s14, 0
    %p75 = por %p73, %p74
    %p76 = scmp.ne.s32.totalorder %s62, %s63
    %p77 = scmp.eq.s32.totalorder %s15, 1
    %p78 = por %p76, %p77
    %p80 = scmp.ne.s32.totalorder %s63, %s79
    %p81 = scmp.eq.s32.totalorder %s15, 0
    %p82 = por %p80, %p81
    %s83 = ssub.s32 %s16, %s28
    %p84 = scmp.eq.s32.totalorder %s83, 0
    %s86 = sadd.s32 %s85, 1
    %s87 = scalar_select %p84, %s85, %s86
    %p90 = pneg %p84
    %p91 = scmp.eq.s32.totalorder %s9, 1
    %p92 = por %p90, %p91
    %p93 = scmp.ne.s32.totalorder %s85, %s88
    %p94 = scmp.eq.s32.totalorder %s9, 0
    %p95 = por %p93, %p94
    %p96 = scmp.ne.s32.totalorder %s85, %s88
    %p97 = scmp.eq.s32.totalorder %s14, 1
    %p98 = por %p96, %p97
    %p99 = scmp.ne.s32.totalorder %s88, %s89
    %p100 = scmp.eq.s32.totalorder %s14, 0
    %p101 = por %p99, %p100
    %p102 = scmp.ne.s32.totalorder %s88, %s89
    %p103 = scmp.eq.s32.totalorder %s15, 1
    %p104 = por %p102, %p103
    %p106 = scmp.ne.s32.totalorder %s89, %s105
    %p107 = scmp.eq.s32.totalorder %s15, 0
    %p108 = por %p106, %p107
    %p109 = scmp.le.s32.totalorder 1, %s9
    %p110 = scmp.lt.s32.totalorder %s9, 3
    %p111 = pnand %p109, %p110
    %p112 = pneg %p111
    // Predicated region
    $region9: #{cross_modality_inter_conv_forward.2} parent=5 // pred_check
      _
    $region10: #{cross_modality_inter_conv_forward.2} parent=5 // pred_check_branch
      %114 = sbr.rel (%p111) target = $region12
    $region11: #{cross_modality_inter_conv_forward.2} parent=5 // pred_region
      %s115 = ssub.s32 %s9, 1
    $region12: #{cross_modality_inter_conv_forward.2} parent=5 // pred_fallthru
      _
    %p116 = scmp.lt.s32.totalorder %s9, 2
    // Predicated region
    $region13: #{cross_modality_inter_conv_forward.2} parent=5 // pred_check
      %p117 = pneg %p116
    $region14: #{cross_modality_inter_conv_forward.2} parent=5 // pred_check_branch
      %119 = sbr.rel (%p117) target = $region16
    $region15: #{cross_modality_inter_conv_forward.2} parent=5 // pred_region
      // Predicated region
      $region17: #{cross_modality_inter_conv_forward.2} parent=15 // pred_check
        %p120 = pneg %p43
      $region18: #{cross_modality_inter_conv_forward.2} parent=15 // pred_check_branch
        %122 = sbr.rel (%p120) target = $region20
      $region19: #{cross_modality_inter_conv_forward.2} parent=15 // pred_region
        %s123 = smul.u32 2, %s17
        %p124 = scmp.lt.s32.totalorder %s16, 1
        %s125 = scalar_select %p124, %s16, 1
        %p126 = scmp.lt.s32.totalorder %s123, 1
        %s127 = scalar_select %p126, %s123, 1
        %s128 = smul.addr %s125, 4
        %s129 = sadd.s32 %s127, %s128
        %s130 = smul.addr %s129, 8
        %s131 = scalar_lea.vmem %s0, %s130
        %s132 = smul.u32 2, %s17
      $region20: #{cross_modality_inter_conv_forward.2} parent=15 // pred_fallthru
        _
    $region16: #{cross_modality_inter_conv_forward.2} parent=5 // pred_fallthru
      _
    %p133 = scmp.le.s32.totalorder 1, %s9
    %p134 = scmp.lt.s32.totalorder %s9, 3
    %p135 = pnand %p133, %p134
    %p136 = pneg %p135
    // Predicated region
    $region21: #{cross_modality_inter_conv_forward.2} parent=5 // pred_check
      _
    $region22: #{cross_modality_inter_conv_forward.2} parent=5 // pred_check_branch
      %138 = sbr.rel (%p135) target = $region24
    $region23: #{cross_modality_inter_conv_forward.2} parent=5 // pred_region
      %s139 = ssub.s32 %s9, 1
      %s140 = smul.u32 2, %s19
      %p141 = scmp.lt.s32.totalorder %s18, 1
      %s142 = scalar_select %p141, %s18, 1
      %p143 = scmp.lt.s32.totalorder %s140, 1
      %s144 = scalar_select %p143, %s140, 1
      %s145 = smul.addr %s142, 4
      %s146 = sadd.s32 %s144, %s145
      %s147 = smul.addr %s146, 8
      %s148 = scalar_lea.vmem %s0, %s147
      %p149 = pneg %p49
      %p150 = pneg %p46
      %p151 = pneg %p75
      %p152 = pneg %p72
      %p153 = scmp.lt.s32.totalorder %s18, 1
      %s154 = scalar_select %p153, %s18, 1
      %s155 = smul.addr %s154, 2
      %s156 = smul.addr %s155, 8
      %s157 = scalar_lea.vmem %s1, %s156
      %p158 = pneg %p101
      %p159 = pneg %p98
      %p160 = scmp.lt.s32.totalorder %s18, 1
      %s161 = scalar_select %p160, %s18, 1
      %s162 = smul.addr %s161, 2
      %s163 = smul.addr %s162, 8
      %s164 = scalar_lea.vmem %s2, %s163
      %s165 = smul.u32 2, %s19
      %p166 = scmp.lt.s32.totalorder %s18, 1
      %s167 = scalar_select %p166, %s18, 1
      %p168 = scmp.lt.s32.totalorder %s165, 1
      %s169 = scalar_select %p168, %s165, 1
      %s170 = smul.addr %s167, 4
      %s171 = sadd.s32 %s169, %s170
      %s172 = smul.addr %s171, 8
      %s173 = scalar_lea.vmem %s0, %s172
      %s174 = smul.u32 2, %s19
      %p175 = scmp.lt.s32.totalorder %s18, 1
      %s176 = scalar_select %p175, %s18, 1
      %s177 = smul.addr %s176, 2
      %s178 = smul.addr %s177, 8
      %s179 = scalar_lea.vmem %s1, %s178
      %p180 = scmp.lt.s32.totalorder %s18, 1
      %s181 = scalar_select %p180, %s18, 1
      %s182 = smul.addr %s181, 2
      %s183 = smul.addr %s182, 8
      %s184 = scalar_lea.vmem %s2, %s183
      %p185 = scmp.eq.s32.totalorder %s19, 0
      // Predicated region
      $region25: #{cross_modality_inter_conv_forward.2} parent=23 // pred_check
        %p186 = pneg %p185
      $region26: #{cross_modality_inter_conv_forward.2} parent=23 // pred_check_branch
        %188 = sbr.rel (%p186) target = $region28
      $region27: #{cross_modality_inter_conv_forward.2} parent=23 // pred_region
        %189 = vst [vmem:[%s179] sm:$0xff] 0.0
        %190 = vst [vmem:[%s179 + $0x8] sm:$0xff] 0.0
        %191 = vst [vmem:[%s184] sm:$0xff] -inf
        %192 = vst [vmem:[%s184 + $0x8] sm:$0xff] -inf
      $region28: #{cross_modality_inter_conv_forward.2} parent=23 // pred_fallthru
        _
      %v193 = vld [vmem:[%s173] sm:$0xff]
      %v194 = vld [vmem:[%s173 + $0x10] sm:$0xff]
      %v195 = vadd.f32 %v193, 0.0
      %v196 = vadd.f32 %v194, 0.0
      %v197 = vld [vmem:[%s173 + $0x8] sm:$0xff]
      %v198 = vld [vmem:[%s173 + $0x18] sm:$0xff]
      %v199 = vadd.f32 %v195, %v197
      %v200 = vadd.f32 %v196, %v198
      %v201 = vmax.f32 %v193, %v197
      %v202 = vmax.f32 %v194, %v198
      %v203 = vld [vmem:[%s179] sm:$0xff]
      %v204 = vld [vmem:[%s179 + $0x8] sm:$0xff]
      %v205 = vadd.f32 %v203, %v199
      %v206 = vadd.f32 %v204, %v200
      %207 = vst [vmem:[%s179] sm:$0xff] %v205
      %208 = vst [vmem:[%s179 + $0x8] sm:$0xff] %v206
      %v209 = vld [vmem:[%s184] sm:$0xff]
      %v210 = vld [vmem:[%s184 + $0x8] sm:$0xff]
      %v211 = vmax.f32 %v209, %v201
      %v212 = vmax.f32 %v210, %v202
      %213 = vst [vmem:[%s184] sm:$0xff] %v211
      %214 = vst [vmem:[%s184 + $0x8] sm:$0xff] %v212
      %p215 = scmp.lt.s32.totalorder %s18, 1
      %s216 = scalar_select %p215, %s18, 1
      %s217 = smul.addr %s216, 2
      %s218 = smul.addr %s217, 8
      %s219 = scalar_lea.vmem %s1, %s218
      %p220 = scmp.lt.s32.totalorder %s18, 1
      %s221 = scalar_select %p220, %s18, 1
      %s222 = smul.addr %s221, 2
      %s223 = smul.addr %s222, 8
      %s224 = scalar_lea.vmem %s2, %s223
      // Predicated region
      $region29: #{cross_modality_inter_conv_forward.2} parent=23 // pred_check
        %p225 = pneg %p72
      $region30: #{cross_modality_inter_conv_forward.2} parent=23 // pred_check_branch
        %227 = sbr.rel (%p225) target = $region32
      $region31: #{cross_modality_inter_conv_forward.2} parent=23 // pred_region
        _
      $region32: #{cross_modality_inter_conv_forward.2} parent=23 // pred_fallthru
        _
      // Predicated region
      $region33: #{cross_modality_inter_conv_forward.2} parent=23 // pred_check
        %p228 = pneg %p98
      $region34: #{cross_modality_inter_conv_forward.2} parent=23 // pred_check_branch
        %230 = sbr.rel (%p228) target = $region36
      $region35: #{cross_modality_inter_conv_forward.2} parent=23 // pred_region
        _
      $region36: #{cross_modality_inter_conv_forward.2} parent=23 // pred_fallthru
        _
    $region24: #{cross_modality_inter_conv_forward.2} parent=5 // pred_fallthru
      _
    %p231 = scmp.le.s32.totalorder 2, %s9
    // Predicated region
    $region37: #{cross_modality_inter_conv_forward.2} parent=5 // pred_check
      %p232 = pneg %p231
    $region38: #{cross_modality_inter_conv_forward.2} parent=5 // pred_check_branch
      %234 = sbr.rel (%p232) target = $region40
    $region39: #{cross_modality_inter_conv_forward.2} parent=5 // pred_region
      %s235 = ssub.s32 %s9, 2
      // Predicated region
      $region41: #{cross_modality_inter_conv_forward.2} parent=39 // pred_check
        %p236 = pneg %p78
      $region42: #{cross_modality_inter_conv_forward.2} parent=39 // pred_check_branch
        %238 = sbr.rel (%p236) target = $region44
      $region43: #{cross_modality_inter_conv_forward.2} parent=39 // pred_region
        %p239 = scmp.lt.s32.totalorder %s20, 1
        %s240 = scalar_select %p239, %s20, 1
        %s241 = smul.addr %s240, 2
        %s242 = smul.addr %s241, 8
        %s243 = scalar_lea.vmem %s1, %s242
      $region44: #{cross_modality_inter_conv_forward.2} parent=39 // pred_fallthru
        _
      // Predicated region
      $region45: #{cross_modality_inter_conv_forward.2} parent=39 // pred_check
        %p244 = pneg %p104
      $region46: #{cross_modality_inter_conv_forward.2} parent=39 // pred_check_branch
        %246 = sbr.rel (%p244) target = $region48
      $region47: #{cross_modality_inter_conv_forward.2} parent=39 // pred_region
        %p247 = scmp.lt.s32.totalorder %s20, 1
        %s248 = scalar_select %p247, %s20, 1
        %s249 = smul.addr %s248, 2
        %s250 = smul.addr %s249, 8
        %s251 = scalar_lea.vmem %s2, %s250
      $region48: #{cross_modality_inter_conv_forward.2} parent=39 // pred_fallthru
        _
    $region40: #{cross_modality_inter_conv_forward.2} parent=5 // pred_fallthru
      _
  $region6: #{cross_modality_inter_conv_forward.2} parent=0 // loop_footer
    %s13 = sadd.s32 1, %s9
  $region7: #{cross_modality_inter_conv_forward.2} parent=0 // loop_footer_branch
    %8 = sbr.rel target = $region3
  $region8: #{cross_modality_inter_conv_forward.2} parent=0 // loop_exit
    _

</llo_original>
